<compile_context>
chip_gen: v6e
topology: v6e:2x2x1
jax: 0.10.0
libtpu: 0.0.40
codegen_flags: <defaults>
</compile_context>

<pallas_src>
import jax
import jax.numpy as jnp
from jax.experimental import pallas as pl
from jax.experimental.pallas import tpu as pltpu


_LANE = 128          # lane width / MXU alignment
_SUBLANE_BF16 = 16   # bf16 sublane packing


def _round_up(x, m):
    return ((x + m - 1) // m) * m


def _gelu_exact(x):
    # PyTorch nn.GELU default: 0.5 * x * (1 + erf(x / sqrt(2)))
    return 0.5 * x * (1.0 + jax.lax.erf(x * jnp.float32(0.7071067811865476)))


# ---------------------------------------------------------------------------
# Kernel: 3-layer classifier on one batch tile. BatchNorm is already folded
# into w1/b1; all padded rows/columns are zero so they contribute nothing
# (GELU(0) == 0) and padded outputs are sliced off in the wrapper.
# ---------------------------------------------------------------------------
def cls_head_kernel(x_ref, w1_ref, b1_ref, w2_ref, b2_ref, w3_ref, b3_ref,
                    out_ref):
    # Linear(E, E//2) -> GELU
    h = jnp.dot(x_ref[...], w1_ref[...],
                preferred_element_type=jnp.float32) + b1_ref[...]
    h = _gelu_exact(h)
    # Linear(E//2, E//4) -> GELU
    h = jnp.dot(h.astype(w2_ref.dtype), w2_ref[...],
                preferred_element_type=jnp.float32) + b2_ref[...]
    h = _gelu_exact(h)
    # Linear(E//4, C_pad)
    out_ref[...] = (jnp.dot(h.astype(w3_ref.dtype), w3_ref[...],
                            preferred_element_type=jnp.float32) + b3_ref[...])


def init_cls_head_params(key, embed_dim, num_classes, *, std=0.01):
    """Synthetic parameters matching ClsHead.__init__ (layers=3)."""
    c0, c1, c2 = embed_dim, embed_dim // 2, embed_dim // 4
    k1, k2, k3, k4, k5, k6, k7 = jax.random.split(key, 7)
    # PyTorch Linear stores (out, in); we keep (in, out) so the kernel does x @ W + b.
    return {
        "w1": std * jax.random.normal(k1, (c0, c1), jnp.float32),
        "b1": jnp.zeros((c1,), jnp.float32),
        "w2": std * jax.random.normal(k2, (c1, c2), jnp.float32),
        "b2": jnp.zeros((c2,), jnp.float32),
        "w3": std * jax.random.normal(k3, (c2, num_classes), jnp.float32),
        "b3": jnp.zeros((num_classes,), jnp.float32),
        # Non-trivial eval-mode BatchNorm2d statistics so the fold is exercised.
        "gamma": 1.0 + 0.2 * jax.random.normal(k4, (c0,), jnp.float32),
        "beta": 0.2 * jax.random.normal(k5, (c0,), jnp.float32),
        "running_mean": 0.5 * jax.random.normal(k6, (c0,), jnp.float32),
        "running_var": 1.0 + 0.5 * jax.random.uniform(k7, (c0,), jnp.float32),
        "eps": 1e-6,
    }


def prepare_cls_head(params, *, class_align=256):
    """One-time weight prep (call at model load, NOT per forward):
       - fold eval-mode BatchNorm2d into the first Linear,
       - zero-pad E / E//2 / E//4 / num_classes to lane/MXU-aligned widths,
       - cast matmul operands to bf16 (biases stay f32)."""
    w1, b1 = params["w1"], params["b1"]
    w2, b2 = params["w2"], params["b2"]
    w3, b3 = params["w3"], params["b3"]
    E, h1 = w1.shape
    h2 = w2.shape[1]
    num_classes = w3.shape[1]

    # Eval-mode BN: y = x*scale + shift, so (x*scale+shift)@w1 + b1
    #             = x @ (scale[:,None]*w1) + (shift@w1 + b1)
    scale = params["gamma"] / jnp.sqrt(params["running_var"] + params["eps"])
    shift = params["beta"] - params["running_mean"] * scale
    w1f = w1 * scale[:, None]
    b1f = b1 + shift @ w1

    e_pad = _round_up(E, _LANE)
    h1p = _round_up(h1, _LANE)
    h2p = _round_up(h2, _LANE)
    c_pad = _round_up(max(num_classes, class_align), _LANE)  # >=256 fills the 256-wide MXU

    def pad2(w, r, c):
        return jnp.zeros((r, c), jnp.float32).at[:w.shape[0], :w.shape[1]].set(w)

    def pad1(b, n):
        return jnp.zeros((1, n), jnp.float32).at[0, :b.shape[0]].set(b)

    return {
        "w1": pad2(w1f, e_pad, h1p).astype(jnp.bfloat16),
        "b1": pad1(b1f, h1p),
        "w2": pad2(w2, h1p, h2p).astype(jnp.bfloat16),
        "b2": pad1(b2, h2p),
        "w3": pad2(w3, h2p, c_pad).astype(jnp.bfloat16),
        "b3": pad1(b3, c_pad),
        "dims": (E, e_pad, h1p, h2p, c_pad, num_classes),
    }


def _vmem_bytes(tb, e_pad, h1p, h2p, c_pad):
    """Conservative VMEM footprint (assumes default double-buffering even for
    the resident weights, so it also covers the Buffered(1) fallback path)."""
    weights = 2 * 2 * (e_pad * h1p + h1p * h2p + h2p * c_pad)   # bf16, 2 buffers
    biases = 2 * 4 * (h1p + h2p + c_pad)                        # f32, 2 buffers
    x_io = 2 * tb * e_pad * 2 + 2 * tb * c_pad * 4              # double-buffered x / out
    interm = tb * (h1p + h2p) * 4 + tb * max(h1p, h2p) * 2      # f32 activations + bf16 recast
    return weights + biases + x_io + interm


def cls_head_forward(x, prepped, *, tb=1024, vmem_budget_bytes=48 * 1024 * 1024):
    E, e_pad, h1p, h2p, c_pad, num_classes = prepped["dims"]

    # Glue: accept (B, E) or NCHW (B, E, 1, 1) like the PyTorch module.
    if x.ndim == 4:
        x = x.reshape(x.shape[0], -1)
    B = x.shape[0]
    assert x.shape[1] == E, f"expected embed_dim={E}, got {x.shape[1]}"

    # bf16 MXU operand; zero-pad E to a lane-aligned width (zeros hit zero w1 rows).
    xb = x.astype(jnp.bfloat16)
    if e_pad != E:
        xb = jnp.pad(xb, ((0, 0), (0, e_pad - E)))

    # ---- Batch tile sizing (multiple of 16 = bf16 sublane packing) ----
    tb = max(_SUBLANE_BF16,
             _round_up(min(tb, _round_up(B, _SUBLANE_BF16)), _SUBLANE_BF16))
    # v7x megacore: keep >=2 grid steps when the batch is big enough.
    if _round_up(B, _SUBLANE_BF16) >= 2 * _SUBLANE_BF16:
        tb = min(tb, _round_up(_round_up(B, _SUBLANE_BF16) // 2, _SUBLANE_BF16))
    # Shrink until the footprint fits the explicit VMEM budget.
    while tb > _SUBLANE_BF16 and _vmem_bytes(tb, e_pad, h1p, h2p, c_pad) > vmem_budget_bytes:
        tb = max(_SUBLANE_BF16, _round_up(tb // 2, _SUBLANE_BF16))
    # TODO(synk): for very large E (resident weights alone exceed the budget,
    # ~E>=6-8k on v7x) add a K-tiled grid axis with an f32 VMEM accumulator
    # instead of keeping all three weight matrices resident.

    b_pad = _round_up(B, tb)
    if b_pad != B:
        xb = jnp.pad(xb, ((0, b_pad - B), (0, 0)))
    grid = (b_pad // tb,)

    footprint = _vmem_bytes(tb, e_pad, h1p, h2p, c_pad)
    vmem_limit = int(min(max(footprint + (4 << 20), 32 << 20), 100 << 20))

    flops = 2 * b_pad * (e_pad * h1p + h1p * h2p + h2p * c_pad)
    bytes_accessed = (xb.size * 2
                      + (prepped["w1"].size + prepped["w2"].size + prepped["w3"].size) * 2
                      + (prepped["b1"].size + prepped["b2"].size + prepped["b3"].size) * 4
                      + b_pad * c_pad * 4)

    tiled = lambda i: (i, 0)      # x / out march over the batch
    resident = lambda i: (0, 0)   # weights & biases: same block every step -> stay in VMEM

    def run(weight_mode):
        def wspec(shape):
            if weight_mode is None:
                return pl.BlockSpec(shape, resident)
            return pl.BlockSpec(shape, resident, pipeline_mode=weight_mode)

        return pl.pallas_call(
            cls_head_kernel,
            out_shape=jax.ShapeDtypeStruct((b_pad, c_pad), jnp.float32),
            grid_spec=pltpu.PrefetchScalarGridSpec(
                num_scalar_prefetch=0,
                grid=grid,
                in_specs=[
                    pl.BlockSpec((tb, e_pad), tiled),   # x tile
                    wspec((e_pad, h1p)),                # w1 (BN folded, padded)
                    wspec((1, h1p)),                    # b1
                    wspec((h1p, h2p)),                  # w2
                    wspec((1, h2p)),                    # b2
                    wspec((h2p, c_pad)),                # w3 (padded classes)
                    wspec((1, c_pad)),                  # b3
                ],
                out_specs=pl.BlockSpec((tb, c_pad), tiled),
            ),
            compiler_params=pltpu.CompilerParams(
                dimension_semantics=("parallel",),      # megacore-shard batch on v7x
                vmem_limit_bytes=vmem_limit,
            ),
            cost_estimate=pl.CostEstimate(
                flops=int(flops),
                transcendentals=0,  # exact-erf GELU lowers to a VPU polynomial, not an EUP op
                bytes_accessed=int(bytes_accessed),
            ),
        )(xb, prepped["w1"], prepped["b1"], prepped["w2"], prepped["b2"],
          prepped["w3"], prepped["b3"])

    # Resident weights only need one buffer (constant index_map). Fall back to
    # default double-buffering if this JAX/Mosaic build rejects Buffered(1).
    try:
        out = run(pl.Buffered(1))
    except Exception:
        out = run(None)

    return out[:B, :num_classes]


def _reference_forward(x, params):
    """Pure-JAX f32 reference matching the PyTorch module (eval mode)."""
    if x.ndim == 4:
        x = x.reshape(x.shape[0], -1)
    scale = params["gamma"] / jnp.sqrt(params["running_var"] + params["eps"])
    shift = params["beta"] - params["running_mean"] * scale
    h = x * scale + shift                                   # eval-mode BatchNorm2d
    h = jax.nn.gelu(h @ params["w1"] + params["b1"], approximate=False)
    h = jax.nn.gelu(h @ params["w2"] + params["b2"], approximate=False)
    return h @ params["w3"] + params["b3"]


if __name__ == "__main__":
    B, EMBED_DIM, NUM_CLASSES = 2, 32, 5

    key = jax.random.PRNGKey(0)
    k_params, k_x = jax.random.split(key)
    # std=0.1 (vs PyTorch's 0.01 init) only so the numeric check is meaningful;
    # forward-pass semantics are unaffected by parameter values.
    params = init_cls_head_params(k_params, EMBED_DIM, NUM_CLASSES, std=0.1)
    x = jax.random.normal(k_x, (B, EMBED_DIM, 1, 1), jnp.float32)  # NCHW, like PyTorch

    prepped = prepare_cls_head(params)          # one-time weight prep (folded + padded + bf16)
    out = cls_head_forward(x, prepped)
    out = jax.block_until_ready(out)

    ref = _reference_forward(x, params)
    assert out.shape == (B, NUM_CLASSES)
    # bf16 matmul operands with f32 accumulation vs f32 reference.
    assert jnp.allclose(out, ref, atol=2e-3, rtol=3e-2), "mismatch vs reference"

    print("KERNEL_OK")
</pallas_src>

<mosaic_0001>
module attributes {stable_mosaic.version = 11 : i64} {
  func.func @cls_head_kernel(%arg0: i32, %arg1: memref<16x128xbf16, #tpu.memory_space<vmem>>, %arg2: memref<128x128xbf16, #tpu.memory_space<vmem>>, %arg3: memref<1x128xf32, #tpu.memory_space<vmem>>, %arg4: memref<128x128xbf16, #tpu.memory_space<vmem>>, %arg5: memref<1x128xf32, #tpu.memory_space<vmem>>, %arg6: memref<128x256xbf16, #tpu.memory_space<vmem>>, %arg7: memref<1x256xf32, #tpu.memory_space<vmem>>, %arg8: memref<16x256xf32, #tpu.memory_space<vmem>>) attributes {dimension_semantics = [#tpu.dimension_semantics<parallel>], iteration_bounds = array<i64: 1>, scalar_prefetch = 0 : i64, scratch_operands = 0 : i64, tpu.core_type = #tpu.core_type<tc>, window_params = [{transform_indices = @transform_0, window_bounds = array<i64: 16, 128>}, {pipeline_mode = #tpu.pipeline_mode<synchronous>, transform_indices = @transform_1, window_bounds = array<i64: 128, 128>}, {pipeline_mode = #tpu.pipeline_mode<synchronous>, transform_indices = @transform_2, window_bounds = array<i64: 1, 128>}, {pipeline_mode = #tpu.pipeline_mode<synchronous>, transform_indices = @transform_3, window_bounds = array<i64: 128, 128>}, {pipeline_mode = #tpu.pipeline_mode<synchronous>, transform_indices = @transform_4, window_bounds = array<i64: 1, 128>}, {pipeline_mode = #tpu.pipeline_mode<synchronous>, transform_indices = @transform_5, window_bounds = array<i64: 128, 256>}, {pipeline_mode = #tpu.pipeline_mode<synchronous>, transform_indices = @transform_6, window_bounds = array<i64: 1, 256>}, {transform_indices = @transform_7, window_bounds = array<i64: 16, 256>}]} {
    %c0 = arith.constant 0 : index
    %c0_0 = arith.constant 0 : index
    %0 = vector.load %arg1[%c0, %c0_0] : memref<16x128xbf16, #tpu.memory_space<vmem>>, vector<16x128xbf16>
    %c0_1 = arith.constant 0 : index
    %c0_2 = arith.constant 0 : index
    %1 = vector.load %arg2[%c0_1, %c0_2] : memref<128x128xbf16, #tpu.memory_space<vmem>>, vector<128x128xbf16>
    %cst = arith.constant dense<0.000000e+00> : vector<16x128xf32>
    %2 = tpu.matmul %0, %1, %cst {dimension_numbers = #tpu.dot_dimension_numbers<[1], [0], [0], [1], [0, 0, 1, 1], [], []>} : vector<16x128xbf16>, vector<128x128xbf16>, vector<16x128xf32> -> vector<16x128xf32>
    %c0_3 = arith.constant 0 : index
    %c0_4 = arith.constant 0 : index
    %3 = vector.load %arg3[%c0_3, %c0_4] : memref<1x128xf32, #tpu.memory_space<vmem>>, vector<1x128xf32>
    %4 = vector.broadcast %3 : vector<1x128xf32> to vector<16x128xf32>
    %5 = arith.addf %2, %4 : vector<16x128xf32>
    %cst_5 = arith.constant 5.000000e-01 : f32
    %6 = vector.broadcast %cst_5 : f32 to vector<16x128xf32>
    %7 = arith.mulf %6, %5 : vector<16x128xf32>
    %cst_6 = arith.constant 0.707106769 : f32
    %8 = vector.broadcast %cst_6 : f32 to vector<16x128xf32>
    %9 = arith.mulf %5, %8 : vector<16x128xf32>
    %10 = math.erf %9 : vector<16x128xf32>
    %cst_7 = arith.constant 1.000000e+00 : f32
    %11 = vector.broadcast %cst_7 : f32 to vector<16x128xf32>
    %12 = arith.addf %11, %10 : vector<16x128xf32>
    %13 = arith.mulf %7, %12 : vector<16x128xf32>
    %14 = arith.truncf %13 : vector<16x128xf32> to vector<16x128xbf16>
    %c0_8 = arith.constant 0 : index
    %c0_9 = arith.constant 0 : index
    %15 = vector.load %arg4[%c0_8, %c0_9] : memref<128x128xbf16, #tpu.memory_space<vmem>>, vector<128x128xbf16>
    %cst_10 = arith.constant dense<0.000000e+00> : vector<16x128xf32>
    %16 = tpu.matmul %14, %15, %cst_10 {dimension_numbers = #tpu.dot_dimension_numbers<[1], [0], [0], [1], [0, 0, 1, 1], [], []>} : vector<16x128xbf16>, vector<128x128xbf16>, vector<16x128xf32> -> vector<16x128xf32>
    %c0_11 = arith.constant 0 : index
    %c0_12 = arith.constant 0 : index
    %17 = vector.load %arg5[%c0_11, %c0_12] : memref<1x128xf32, #tpu.memory_space<vmem>>, vector<1x128xf32>
    %18 = vector.broadcast %17 : vector<1x128xf32> to vector<16x128xf32>
    %19 = arith.addf %16, %18 : vector<16x128xf32>
    %cst_13 = arith.constant 5.000000e-01 : f32
    %20 = vector.broadcast %cst_13 : f32 to vector<16x128xf32>
    %21 = arith.mulf %20, %19 : vector<16x128xf32>
    %cst_14 = arith.constant 0.707106769 : f32
    %22 = vector.broadcast %cst_14 : f32 to vector<16x128xf32>
    %23 = arith.mulf %19, %22 : vector<16x128xf32>
    %24 = math.erf %23 : vector<16x128xf32>
    %cst_15 = arith.constant 1.000000e+00 : f32
    %25 = vector.broadcast %cst_15 : f32 to vector<16x128xf32>
    %26 = arith.addf %25, %24 : vector<16x128xf32>
    %27 = arith.mulf %21, %26 : vector<16x128xf32>
    %28 = arith.truncf %27 : vector<16x128xf32> to vector<16x128xbf16>
    %c0_16 = arith.constant 0 : index
    %c0_17 = arith.constant 0 : index
    %29 = vector.load %arg6[%c0_16, %c0_17] : memref<128x256xbf16, #tpu.memory_space<vmem>>, vector<128x256xbf16>
    %cst_18 = arith.constant dense<0.000000e+00> : vector<16x256xf32>
    %30 = tpu.matmul %28, %29, %cst_18 {dimension_numbers = #tpu.dot_dimension_numbers<[1], [0], [0], [1], [0, 0, 1, 1], [], []>} : vector<16x128xbf16>, vector<128x256xbf16>, vector<16x256xf32> -> vector<16x256xf32>
    %c0_19 = arith.constant 0 : index
    %c0_20 = arith.constant 0 : index
    %31 = vector.load %arg7[%c0_19, %c0_20] : memref<1x256xf32, #tpu.memory_space<vmem>>, vector<1x256xf32>
    %32 = vector.broadcast %31 : vector<1x256xf32> to vector<16x256xf32>
    %33 = arith.addf %30, %32 : vector<16x256xf32>
    %c0_21 = arith.constant 0 : index
    %c0_22 = arith.constant 0 : index
    %34 = vector.load %arg8[%c0_21, %c0_22] : memref<16x256xf32, #tpu.memory_space<vmem>>, vector<16x256xf32>
    tpu.vector_store %arg8[%c0_21, %c0_22], %33 {strides = array<i32>} : memref<16x256xf32, #tpu.memory_space<vmem>>, vector<16x256xf32>,
    return
  }
  func.func @transform_0(%arg0: i32) -> (i32, i32) {
    %c0_i32 = arith.constant 0 : i32
    %c0_i32_0 = arith.constant 0 : i32
    return %arg0, %c0_i32 : i32, i32
  }
  func.func @transform_1(%arg0: i32) -> (i32, i32) {
    %c0_i32 = arith.constant 0 : i32
    %c0_i32_0 = arith.constant 0 : i32
    %c0_i32_1 = arith.constant 0 : i32
    return %c0_i32, %c0_i32_0 : i32, i32
  }
  func.func @transform_2(%arg0: i32) -> (i32, i32) {
    %c0_i32 = arith.constant 0 : i32
    %c0_i32_0 = arith.constant 0 : i32
    %c0_i32_1 = arith.constant 0 : i32
    return %c0_i32, %c0_i32_0 : i32, i32
  }
  func.func @transform_3(%arg0: i32) -> (i32, i32) {
    %c0_i32 = arith.constant 0 : i32
    %c0_i32_0 = arith.constant 0 : i32
    %c0_i32_1 = arith.constant 0 : i32
    return %c0_i32, %c0_i32_0 : i32, i32
  }
  func.func @transform_4(%arg0: i32) -> (i32, i32) {
    %c0_i32 = arith.constant 0 : i32
    %c0_i32_0 = arith.constant 0 : i32
    %c0_i32_1 = arith.constant 0 : i32
    return %c0_i32, %c0_i32_0 : i32, i32
  }
  func.func @transform_5(%arg0: i32) -> (i32, i32) {
    %c0_i32 = arith.constant 0 : i32
    %c0_i32_0 = arith.constant 0 : i32
    %c0_i32_1 = arith.constant 0 : i32
    return %c0_i32, %c0_i32_0 : i32, i32
  }
  func.func @transform_6(%arg0: i32) -> (i32, i32) {
    %c0_i32 = arith.constant 0 : i32
    %c0_i32_0 = arith.constant 0 : i32
    %c0_i32_1 = arith.constant 0 : i32
    return %c0_i32, %c0_i32_0 : i32, i32
  }
  func.func @transform_7(%arg0: i32) -> (i32, i32) {
    %c0_i32 = arith.constant 0 : i32
    %c0_i32_0 = arith.constant 0 : i32
    return %arg0, %c0_i32 : i32, i32
  }
}

module attributes {stable_mosaic.version = 11 : i64} {
  func.func @cls_head_kernel(%arg0: i32, %arg1: memref<16x128xbf16, #tpu.memory_space<vmem>>, %arg2: memref<128x128xbf16, #tpu.memory_space<vmem>>, %arg3: memref<1x128xf32, #tpu.memory_space<vmem>>, %arg4: memref<128x128xbf16, #tpu.memory_space<vmem>>, %arg5: memref<1x128xf32, #tpu.memory_space<vmem>>, %arg6: memref<128x256xbf16, #tpu.memory_space<vmem>>, %arg7: memref<1x256xf32, #tpu.memory_space<vmem>>, %arg8: memref<16x256xf32, #tpu.memory_space<vmem>>) attributes {dimension_semantics = [#tpu.dimension_semantics<parallel>], iteration_bounds = array<i64: 1>, scalar_prefetch = 0 : i64, scratch_operands = 0 : i64, tpu.core_type = #tpu.core_type<tc>, window_params = [{transform_indices = @transform_0, window_bounds = array<i64: 16, 128>}, {pipeline_mode = #tpu.pipeline_mode<synchronous>, transform_indices = @transform_1, window_bounds = array<i64: 128, 128>}, {pipeline_mode = #tpu.pipeline_mode<synchronous>, transform_indices = @transform_2, window_bounds = array<i64: 1, 128>}, {pipeline_mode = #tpu.pipeline_mode<synchronous>, transform_indices = @transform_3, window_bounds = array<i64: 128, 128>}, {pipeline_mode = #tpu.pipeline_mode<synchronous>, transform_indices = @transform_4, window_bounds = array<i64: 1, 128>}, {pipeline_mode = #tpu.pipeline_mode<synchronous>, transform_indices = @transform_5, window_bounds = array<i64: 128, 256>}, {pipeline_mode = #tpu.pipeline_mode<synchronous>, transform_indices = @transform_6, window_bounds = array<i64: 1, 256>}, {transform_indices = @transform_7, window_bounds = array<i64: 16, 256>}]} {
    %c0 = arith.constant 0 : index
    %c0_0 = arith.constant 0 : index
    %0 = vector.load %arg1[%c0, %c0_0] : memref<16x128xbf16, #tpu.memory_space<vmem>>, vector<16x128xbf16>
    %c0_1 = arith.constant 0 : index
    %c0_2 = arith.constant 0 : index
    %1 = vector.load %arg2[%c0_1, %c0_2] : memref<128x128xbf16, #tpu.memory_space<vmem>>, vector<128x128xbf16>
    %cst = arith.constant dense<0.000000e+00> : vector<16x128xf32>
    %2 = tpu.matmul %0, %1, %cst {dimension_numbers = #tpu.dot_dimension_numbers<[1], [0], [0], [1], [0, 0, 1, 1], [], []>} : vector<16x128xbf16>, vector<128x128xbf16>, vector<16x128xf32> -> vector<16x128xf32>
    %c0_3 = arith.constant 0 : index
    %c0_4 = arith.constant 0 : index
    %3 = vector.load %arg3[%c0_3, %c0_4] : memref<1x128xf32, #tpu.memory_space<vmem>>, vector<1x128xf32>
    %4 = vector.broadcast %3 : vector<1x128xf32> to vector<16x128xf32>
    %5 = arith.addf %2, %4 : vector<16x128xf32>
    %cst_5 = arith.constant 5.000000e-01 : f32
    %6 = vector.broadcast %cst_5 : f32 to vector<16x128xf32>
    %7 = arith.mulf %6, %5 : vector<16x128xf32>
    %cst_6 = arith.constant 0.707106769 : f32
    %8 = vector.broadcast %cst_6 : f32 to vector<16x128xf32>
    %9 = arith.mulf %5, %8 : vector<16x128xf32>
    %10 = math.erf %9 : vector<16x128xf32>
    %cst_7 = arith.constant 1.000000e+00 : f32
    %11 = vector.broadcast %cst_7 : f32 to vector<16x128xf32>
    %12 = arith.addf %11, %10 : vector<16x128xf32>
    %13 = arith.mulf %7, %12 : vector<16x128xf32>
    %14 = arith.truncf %13 : vector<16x128xf32> to vector<16x128xbf16>
    %c0_8 = arith.constant 0 : index
    %c0_9 = arith.constant 0 : index
    %15 = vector.load %arg4[%c0_8, %c0_9] : memref<128x128xbf16, #tpu.memory_space<vmem>>, vector<128x128xbf16>
    %cst_10 = arith.constant dense<0.000000e+00> : vector<16x128xf32>
    %16 = tpu.matmul %14, %15, %cst_10 {dimension_numbers = #tpu.dot_dimension_numbers<[1], [0], [0], [1], [0, 0, 1, 1], [], []>} : vector<16x128xbf16>, vector<128x128xbf16>, vector<16x128xf32> -> vector<16x128xf32>
    %c0_11 = arith.constant 0 : index
    %c0_12 = arith.constant 0 : index
    %17 = vector.load %arg5[%c0_11, %c0_12] : memref<1x128xf32, #tpu.memory_space<vmem>>, vector<1x128xf32>
    %18 = vector.broadcast %17 : vector<1x128xf32> to vector<16x128xf32>
    %19 = arith.addf %16, %18 : vector<16x128xf32>
    %cst_13 = arith.constant 5.000000e-01 : f32
    %20 = vector.broadcast %cst_13 : f32 to vector<16x128xf32>
    %21 = arith.mulf %20, %19 : vector<16x128xf32>
    %cst_14 = arith.constant 0.707106769 : f32
    %22 = vector.broadcast %cst_14 : f32 to vector<16x128xf32>
    %23 = arith.mulf %19, %22 : vector<16x128xf32>
    %24 = math.erf %23 : vector<16x128xf32>
    %cst_15 = arith.constant 1.000000e+00 : f32
    %25 = vector.broadcast %cst_15 : f32 to vector<16x128xf32>
    %26 = arith.addf %25, %24 : vector<16x128xf32>
    %27 = arith.mulf %21, %26 : vector<16x128xf32>
    %28 = arith.truncf %27 : vector<16x128xf32> to vector<16x128xbf16>
    %c0_16 = arith.constant 0 : index
    %c0_17 = arith.constant 0 : index
    %29 = vector.load %arg6[%c0_16, %c0_17] : memref<128x256xbf16, #tpu.memory_space<vmem>>, vector<128x256xbf16>
    %cst_18 = arith.constant dense<0.000000e+00> : vector<16x256xf32>
    %30 = tpu.matmul %28, %29, %cst_18 {dimension_numbers = #tpu.dot_dimension_numbers<[1], [0], [0], [1], [0, 0, 1, 1], [], []>} : vector<16x128xbf16>, vector<128x256xbf16>, vector<16x256xf32> -> vector<16x256xf32>
    %c0_19 = arith.constant 0 : index
    %c0_20 = arith.constant 0 : index
    %31 = vector.load %arg7[%c0_19, %c0_20] : memref<1x256xf32, #tpu.memory_space<vmem>>, vector<1x256xf32>
    %32 = vector.broadcast %31 : vector<1x256xf32> to vector<16x256xf32>
    %33 = arith.addf %30, %32 : vector<16x256xf32>
    %c0_21 = arith.constant 0 : index
    %c0_22 = arith.constant 0 : index
    %34 = vector.load %arg8[%c0_21, %c0_22] : memref<16x256xf32, #tpu.memory_space<vmem>>, vector<16x256xf32>
    tpu.vector_store %arg8[%c0_21, %c0_22], %33 {strides = array<i32>} : memref<16x256xf32, #tpu.memory_space<vmem>>, vector<16x256xf32>,
    return
  }
  func.func @transform_0(%arg0: i32) -> (i32, i32) {
    %c0_i32 = arith.constant 0 : i32
    %c0_i32_0 = arith.constant 0 : i32
    return %arg0, %c0_i32 : i32, i32
  }
  func.func @transform_1(%arg0: i32) -> (i32, i32) {
    %c0_i32 = arith.constant 0 : i32
    %c0_i32_0 = arith.constant 0 : i32
    %c0_i32_1 = arith.constant 0 : i32
    return %c0_i32, %c0_i32_0 : i32, i32
  }
  func.func @transform_2(%arg0: i32) -> (i32, i32) {
    %c0_i32 = arith.constant 0 : i32
    %c0_i32_0 = arith.constant 0 : i32
    %c0_i32_1 = arith.constant 0 : i32
    return %c0_i32, %c0_i32_0 : i32, i32
  }
  func.func @transform_3(%arg0: i32) -> (i32, i32) {
    %c0_i32 = arith.constant 0 : i32
    %c0_i32_0 = arith.constant 0 : i32
    %c0_i32_1 = arith.constant 0 : i32
    return %c0_i32, %c0_i32_0 : i32, i32
  }
  func.func @transform_4(%arg0: i32) -> (i32, i32) {
    %c0_i32 = arith.constant 0 : i32
    %c0_i32_0 = arith.constant 0 : i32
    %c0_i32_1 = arith.constant 0 : i32
    return %c0_i32, %c0_i32_0 : i32, i32
  }
  func.func @transform_5(%arg0: i32) -> (i32, i32) {
    %c0_i32 = arith.constant 0 : i32
    %c0_i32_0 = arith.constant 0 : i32
    %c0_i32_1 = arith.constant 0 : i32
    return %c0_i32, %c0_i32_0 : i32, i32
  }
  func.func @transform_6(%arg0: i32) -> (i32, i32) {
    %c0_i32 = arith.constant 0 : i32
    %c0_i32_0 = arith.constant 0 : i32
    %c0_i32_1 = arith.constant 0 : i32
    return %c0_i32, %c0_i32_0 : i32, i32
  }
  func.func @transform_7(%arg0: i32) -> (i32, i32) {
    %c0_i32 = arith.constant 0 : i32
    %c0_i32_0 = arith.constant 0 : i32
    return %arg0, %c0_i32 : i32, i32
  }
}

</mosaic_0001>

<llo_original>
// kernel: tpu_custom_call.1
$region0: #{tpu_custom_call.1}
  #allocation0 [shape = 'u32[]', space=smem, size = 0x4, offset = 0x4, fixed_abs, tag = 'smem constant byte address 0x4 - core index']
  #allocation1 [shape = 'u32[144,128]{1,0:T(1,128)}', space=vmem, size = 0x12000, scoped, tag = 'internal scratch']
  %s0 = inlined_call_operand.hbm [shape: bf16[16,128], index: 0, kind: input, shape index: {}]
  %s1 = inlined_call_operand.hbm [shape: bf16[128,128], index: 1, kind: input, shape index: {}]
  %s2 = inlined_call_operand.vmem [shape: f32[1,128], index: 2, kind: input, shape index: {}]
  %s3 = inlined_call_operand.hbm [shape: bf16[128,128], index: 3, kind: input, shape index: {}]
  %s4 = inlined_call_operand.vmem [shape: f32[1,128], index: 4, kind: input, shape index: {}]
  %s5 = inlined_call_operand.hbm [shape: bf16[128,256], index: 5, kind: input, shape index: {}]
  %s6 = inlined_call_operand.vmem [shape: f32[1,256], index: 6, kind: input, shape index: {}]
  %s7 = inlined_call_operand.hbm [shape: f32[16,256], index: 7, kind: output, shape index: {}]
  %s8 = sld [smem:[#allocation0]]
  $region54: #{tpu_custom_call.1} parent=0
    _
  %s10 = ssub.s32 1, %s8
  %s11 = scalar_select 0, %s10, %s8
  $region1: #{tpu_custom_call.1} parent=0
    #allocation2 [shape = 'u8[4096]{0}', space=vmem, size = 0x1000, scoped, tag = 'input window, operand 0, single buffered']
    #allocation3 [shape = 's32[1]{0}', space=sflag, size = 0x4, scoped, tag = 'scoped memory for tpu_custom_call.1']
    #allocation4 [shape = 's32[1]{0}', space=sflag, size = 0x4, scoped, tag = 'scoped memory for tpu_custom_call.1']
    #allocation5 [shape = 'u8[32768]{0}', space=vmem, size = 0x8000, scoped, tag = 'input window, operand 1, single buffered']
    #allocation6 [shape = 's32[1]{0}', space=sflag, size = 0x4, scoped, tag = 'scoped memory for tpu_custom_call.1']
    #allocation7 [shape = 'u8[32768]{0}', space=vmem, size = 0x8000, scoped, tag = 'input window, operand 3, single buffered']
    #allocation8 [shape = 'u8[65536]{0}', space=vmem, size = 0x10000, scoped, tag = 'input window, operand 5, single buffered']
    #allocation9 [shape = 's32[1]{0}', space=sflag, size = 0x4, scoped, tag = 'scoped memory for tpu_custom_call.1']
    #allocation10 [shape = 'u8[16384]{0}', space=vmem, size = 0x4000, scoped, tag = 'output window, operand 0, single buffered']
    %12 = vsyncpa [#allocation3], 0
    %13 = vsyncpa [#allocation6], 0
    %14 = vsyncpa [#allocation9], 0
    %15 = vsyncpa [#allocation4], 0
    // Predicated region
    $region2: #{tpu_custom_call.1} parent=1 // pred_check
      _
    $region3: #{tpu_custom_call.1} parent=1 // pred_check_branch
      %17 = sbr.rel (0) target = $region5
    $region4: #{tpu_custom_call.1} parent=1 // pred_region
      %s19 = ssub.s32 128, 128
      %20 = vsyncadd [#allocation3], %s19
      %s21 = sshll.u32 [#allocation2], 4
      %s22 = int_to_ptr.vmem [resolvable:$true] %s21
      %27 = dma.hbm_to_vmem [thread:$0]  %s0, 128, %s22, [#allocation3], 64, 64, 4
    $region5: #{tpu_custom_call.1} parent=1 // pred_fallthru
      _
    // Predicated region
    $region6: #{tpu_custom_call.1} parent=1 // pred_check
      _
    $region7: #{tpu_custom_call.1} parent=1 // pred_check_branch
      %29 = sbr.rel (0) target = $region9
    $region8: #{tpu_custom_call.1} parent=1 // pred_region
      %s31 = ssub.s32 1024, 1024
      %32 = vsyncadd [#allocation6], %s31
      %s33 = sshll.u32 [#allocation5], 4
      %s34 = int_to_ptr.vmem [resolvable:$true] %s33
      %39 = dma.hbm_to_vmem [thread:$0]  %s1, 1024, %s34, [#allocation6], 64, 64, 4
    $region9: #{tpu_custom_call.1} parent=1 // pred_fallthru
      _
    // Predicated region
    $region10: #{tpu_custom_call.1} parent=1 // pred_check
      _
    $region11: #{tpu_custom_call.1} parent=1 // pred_check_branch
      %41 = sbr.rel (0) target = $region13
    $region12: #{tpu_custom_call.1} parent=1 // pred_region
      _
    $region13: #{tpu_custom_call.1} parent=1 // pred_fallthru
      _
    // Predicated region
    $region14: #{tpu_custom_call.1} parent=1 // pred_check
      _
    $region15: #{tpu_custom_call.1} parent=1 // pred_check_branch
      %43 = sbr.rel (0) target = $region17
    $region16: #{tpu_custom_call.1} parent=1 // pred_region
      %s45 = ssub.s32 1024, 1024
      %46 = vsyncadd [#allocation6], %s45
      %s47 = sshll.u32 [#allocation7], 4
      %s48 = int_to_ptr.vmem [resolvable:$true] %s47
      %53 = dma.hbm_to_vmem [thread:$0]  %s3, 1024, %s48, [#allocation6], 64, 64, 4
    $region17: #{tpu_custom_call.1} parent=1 // pred_fallthru
      _
    // Predicated region
    $region18: #{tpu_custom_call.1} parent=1 // pred_check
      _
    $region19: #{tpu_custom_call.1} parent=1 // pred_check_branch
      %55 = sbr.rel (0) target = $region21
    $region20: #{tpu_custom_call.1} parent=1 // pred_region
      _
    $region21: #{tpu_custom_call.1} parent=1 // pred_fallthru
      _
    // Predicated region
    $region22: #{tpu_custom_call.1} parent=1 // pred_check
      _
    $region23: #{tpu_custom_call.1} parent=1 // pred_check_branch
      %57 = sbr.rel (0) target = $region25
    $region24: #{tpu_custom_call.1} parent=1 // pred_region
      %s59 = ssub.s32 2048, 2048
      %60 = vsyncadd [#allocation9], %s59
      %s61 = sshll.u32 [#allocation8], 4
      %s62 = int_to_ptr.vmem [resolvable:$true] %s61
      %67 = dma.hbm_to_vmem [thread:$0]  %s5, 2048, %s62, [#allocation9], 128, 128, 8
    $region25: #{tpu_custom_call.1} parent=1 // pred_fallthru
      _
    // Predicated region
    $region26: #{tpu_custom_call.1} parent=1 // pred_check
      _
    $region27: #{tpu_custom_call.1} parent=1 // pred_check_branch
      %69 = sbr.rel (0) target = $region29
    $region28: #{tpu_custom_call.1} parent=1 // pred_region
      _
    $region29: #{tpu_custom_call.1} parent=1 // pred_fallthru
      _
    // Predicated region
    $region30: #{tpu_custom_call.1} parent=1 // pred_check
      _
    $region31: #{tpu_custom_call.1} parent=1 // pred_check_branch
      %71 = sbr.rel (0) target = $region33
    $region32: #{tpu_custom_call.1} parent=1 // pred_region
      %72 = dma.done [#allocation3], 128
    $region33: #{tpu_custom_call.1} parent=1 // pred_fallthru
      _
    // Predicated region
    $region34: #{tpu_custom_call.1} parent=1 // pred_check
      _
    $region35: #{tpu_custom_call.1} parent=1 // pred_check_branch
      %74 = sbr.rel (0) target = $region37
    $region36: #{tpu_custom_call.1} parent=1 // pred_region
      %75 = dma.done [#allocation6], 1024
    $region37: #{tpu_custom_call.1} parent=1 // pred_fallthru
      _
    // Predicated region
    $region38: #{tpu_custom_call.1} parent=1 // pred_check
      _
    $region39: #{tpu_custom_call.1} parent=1 // pred_check_branch
      %77 = sbr.rel (0) target = $region41
    $region40: #{tpu_custom_call.1} parent=1 // pred_region
      %78 = dma.done [#allocation6], 1024
    $region41: #{tpu_custom_call.1} parent=1 // pred_fallthru
      _
    // Predicated region
    $region42: #{tpu_custom_call.1} parent=1 // pred_check
      _
    $region43: #{tpu_custom_call.1} parent=1 // pred_check_branch
      %80 = sbr.rel (0) target = $region45
    $region44: #{tpu_custom_call.1} parent=1 // pred_region
      %81 = dma.done [#allocation9], 2048
    $region45: #{tpu_custom_call.1} parent=1 // pred_fallthru
      _
    %v83 = vld [vmem:[#allocation2] sm:$0xf]
    %v84 = vld [vmem:[#allocation2 + $0x4] sm:$0xf]
    %v85 = vld [vmem:[#allocation5] sm:$0xf]
    %v86 = vld [vmem:[#allocation5 + $0x4] sm:$0xf]
    %v87 = vld [vmem:[#allocation5 + $0x8] sm:$0xf]
    %v88 = vld [vmem:[#allocation5 + $0xc] sm:$0xf]
    %v89 = vld [vmem:[#allocation5 + $0x10] sm:$0xf]
    %v90 = vld [vmem:[#allocation5 + $0x14] sm:$0xf]
    %v91 = vld [vmem:[#allocation5 + $0x18] sm:$0xf]
    %v92 = vld [vmem:[#allocation5 + $0x1c] sm:$0xf]
    %v93 = vld [vmem:[#allocation5 + $0x20] sm:$0xf]
    %v94 = vld [vmem:[#allocation5 + $0x24] sm:$0xf]
    %v95 = vld [vmem:[#allocation5 + $0x28] sm:$0xf]
    %v96 = vld [vmem:[#allocation5 + $0x2c] sm:$0xf]
    %v97 = vld [vmem:[#allocation5 + $0x30] sm:$0xf]
    %v98 = vld [vmem:[#allocation5 + $0x34] sm:$0xf]
    %v99 = vld [vmem:[#allocation5 + $0x38] sm:$0xf]
    %v100 = vld [vmem:[#allocation5 + $0x3c] sm:$0xf]
    %v101 = vld [vmem:[%s2] sm:$0x1]
    %v103 = vlaneseq
    %v104 = vshrl.u32 %v103, 7
    %v105 = vsub.s32 0, %v104
    %v106 = vrot.slane %v101, %v105
    %v110 = vunpack.c.l.b16 %v83
    %v111 = vunpack.c.l.b16 %v84
    %v112 = vpack.c.b16 %v111, %v110
    %v130 = vunpack.c.l.b16 %v85
    %v131 = vunpack.c.l.b16 %v86
    %v132 = vunpack.c.l.b16 %v87
    %v133 = vunpack.c.l.b16 %v88
    %v134 = vunpack.c.l.b16 %v89
    %v135 = vunpack.c.l.b16 %v90
    %v136 = vunpack.c.l.b16 %v91
    %v137 = vunpack.c.l.b16 %v92
    %v138 = vunpack.c.l.b16 %v93
    %v139 = vunpack.c.l.b16 %v94
    %v140 = vunpack.c.l.b16 %v95
    %v141 = vunpack.c.l.b16 %v96
    %v142 = vunpack.c.l.b16 %v97
    %v143 = vunpack.c.l.b16 %v98
    %v144 = vunpack.c.l.b16 %v99
    %v145 = vunpack.c.l.b16 %v100
    %v146 = vpack.c.b16 %v131, %v130
    %v147 = vpack.c.b16 %v133, %v132
    %v148 = vpack.c.b16 %v135, %v134
    %v149 = vpack.c.b16 %v137, %v136
    %v150 = vpack.c.b16 %v139, %v138
    %v151 = vpack.c.b16 %v141, %v140
    %v152 = vpack.c.b16 %v143, %v142
    %v153 = vpack.c.b16 %v145, %v144
    %162 = vmatprep.subr.bf16.mxu0 0
    %163 = vmatpush1.bf16.msra.mxu0 %v153
    %164 = vmatprep.subr.bf16.mxu0 0
    %165 = vmatpush1.bf16.msra.mxu0 %v152
    %166 = vmatprep.subr.bf16.mxu0 0
    %167 = vmatpush1.bf16.msra.mxu0 %v151
    %168 = vmatprep.subr.bf16.mxu0 0
    %169 = vmatpush1.bf16.msra.mxu0 %v150
    %170 = vmatprep.subr.bf16.mxu0 0
    %171 = vmatpush1.bf16.msra.mxu0 %v149
    %172 = vmatprep.subr.bf16.mxu0 0
    %173 = vmatpush1.bf16.msra.mxu0 %v148
    %174 = vmatprep.subr.bf16.mxu0 0
    %175 = vmatpush1.bf16.msra.mxu0 %v147
    %176 = vmatprep.subr.bf16.mxu0 0
    %177 = vmatpush1.bf16.msra.mxu0 %v146
    %178 = vmatprep.subr.bf16.mxu0 0
    %179 = vmatpush2.bf16.msra.mxu0 0
    %180 = vmatprep.subr.bf16.mxu0 0
    %181 = vmatpush2.bf16.msra.mxu0 0
    %182 = vmatprep.subr.bf16.mxu0 0
    %183 = vmatpush2.bf16.msra.mxu0 0
    %184 = vmatprep.subr.bf16.mxu0 0
    %185 = vmatpush2.bf16.msra.mxu0 0
    %186 = vmatprep.subr.bf16.mxu0 0
    %187 = vmatpush2.bf16.msra.mxu0 0
    %188 = vmatprep.subr.bf16.mxu0 0
    %189 = vmatpush2.bf16.msra.mxu0 0
    %190 = vmatprep.subr.bf16.mxu0 0
    %191 = vmatpush2.bf16.msra.mxu0 0
    %192 = vmatprep.subr.bf16.mxu0 0
    %193 = vmatpush2.bf16.msra.mxu0 0
    %194 = vmatprep.mubr.bf16.mxu0 0
    %195 = vmatmul.mubr.bf16.gmra.mxu0 %v112
    %v196 = vpop.f32.mrf.mxu0
    %v197 = vadd.f32 %v106, %v196
    %v198 = vpop.f32.mrf.mxu0
    %v199 = vpop.f32.mrf.mxu0
    %v200 = vadd.f32 %v106, %v199
    %v201 = vpop.f32.mrf.mxu0
    %202 = vdwg.mxu0
    %v203 = vmul.f32 %v197, 0.5
    %v204 = vmul.f32 %v200, 0.5
    %v205 = vmul.f32 %v197, 0.70710677
    %v206 = vmul.f32 %v200, 0.70710677
    %v207 = verf.f32.pop %v205
    %v208 = verf.f32.pop %v206
    %v209 = vadd.f32 %v207, 1.0
    %v210 = vadd.f32 %v208, 1.0
    %v211 = vmul.f32 %v203, %v209
    %v212 = vmul.f32 %v204, %v210
    %v213 = vpack.c.bf16 %v212, %v211
    %v214 = vld [vmem:[#allocation7] sm:$0xf]
    %v215 = vld [vmem:[#allocation7 + $0x4] sm:$0xf]
    %v216 = vld [vmem:[#allocation7 + $0x8] sm:$0xf]
    %v217 = vld [vmem:[#allocation7 + $0xc] sm:$0xf]
    %v218 = vld [vmem:[#allocation7 + $0x10] sm:$0xf]
    %v219 = vld [vmem:[#allocation7 + $0x14] sm:$0xf]
    %v220 = vld [vmem:[#allocation7 + $0x18] sm:$0xf]
    %v221 = vld [vmem:[#allocation7 + $0x1c] sm:$0xf]
    %v222 = vld [vmem:[#allocation7 + $0x20] sm:$0xf]
    %v223 = vld [vmem:[#allocation7 + $0x24] sm:$0xf]
    %v224 = vld [vmem:[#allocation7 + $0x28] sm:$0xf]
    %v225 = vld [vmem:[#allocation7 + $0x2c] sm:$0xf]
    %v226 = vld [vmem:[#allocation7 + $0x30] sm:$0xf]
    %v227 = vld [vmem:[#allocation7 + $0x34] sm:$0xf]
    %v228 = vld [vmem:[#allocation7 + $0x38] sm:$0xf]
    %v229 = vld [vmem:[#allocation7 + $0x3c] sm:$0xf]
    %v230 = vld [vmem:[%s4] sm:$0x1]
    %v232 = vlaneseq
    %v233 = vshrl.u32 %v232, 7
    %v234 = vsub.s32 0, %v233
    %v235 = vrot.slane %v230, %v234
    %v253 = vunpack.c.l.b16 %v214
    %v254 = vunpack.c.l.b16 %v215
    %v255 = vunpack.c.l.b16 %v216
    %v256 = vunpack.c.l.b16 %v217
    %v257 = vunpack.c.l.b16 %v218
    %v258 = vunpack.c.l.b16 %v219
    %v259 = vunpack.c.l.b16 %v220
    %v260 = vunpack.c.l.b16 %v221
    %v261 = vunpack.c.l.b16 %v222
    %v262 = vunpack.c.l.b16 %v223
    %v263 = vunpack.c.l.b16 %v224
    %v264 = vunpack.c.l.b16 %v225
    %v265 = vunpack.c.l.b16 %v226
    %v266 = vunpack.c.l.b16 %v227
    %v267 = vunpack.c.l.b16 %v228
    %v268 = vunpack.c.l.b16 %v229
    %v269 = vpack.c.b16 %v254, %v253
    %v270 = vpack.c.b16 %v256, %v255
    %v271 = vpack.c.b16 %v258, %v257
    %v272 = vpack.c.b16 %v260, %v259
    %v273 = vpack.c.b16 %v262, %v261
    %v274 = vpack.c.b16 %v264, %v263
    %v275 = vpack.c.b16 %v266, %v265
    %v276 = vpack.c.b16 %v268, %v267
    %285 = vmatprep.subr.bf16.mxu0 0
    %286 = vmatpush1.bf16.msra.mxu0 %v276
    %287 = vmatprep.subr.bf16.mxu0 0
    %288 = vmatpush1.bf16.msra.mxu0 %v275
    %289 = vmatprep.subr.bf16.mxu0 0
    %290 = vmatpush1.bf16.msra.mxu0 %v274
    %291 = vmatprep.subr.bf16.mxu0 0
    %292 = vmatpush1.bf16.msra.mxu0 %v273
    %293 = vmatprep.subr.bf16.mxu0 0
    %294 = vmatpush1.bf16.msra.mxu0 %v272
    %295 = vmatprep.subr.bf16.mxu0 0
    %296 = vmatpush1.bf16.msra.mxu0 %v271
    %297 = vmatprep.subr.bf16.mxu0 0
    %298 = vmatpush1.bf16.msra.mxu0 %v270
    %299 = vmatprep.subr.bf16.mxu0 0
    %300 = vmatpush1.bf16.msra.mxu0 %v269
    %301 = vmatprep.subr.bf16.mxu0 0
    %302 = vmatpush2.bf16.msra.mxu0 0
    %303 = vmatprep.subr.bf16.mxu0 0
    %304 = vmatpush2.bf16.msra.mxu0 0
    %305 = vmatprep.subr.bf16.mxu0 0
    %306 = vmatpush2.bf16.msra.mxu0 0
    %307 = vmatprep.subr.bf16.mxu0 0
    %308 = vmatpush2.bf16.msra.mxu0 0
    %309 = vmatprep.subr.bf16.mxu0 0
    %310 = vmatpush2.bf16.msra.mxu0 0
    %311 = vmatprep.subr.bf16.mxu0 0
    %312 = vmatpush2.bf16.msra.mxu0 0
    %313 = vmatprep.subr.bf16.mxu0 0
    %314 = vmatpush2.bf16.msra.mxu0 0
    %315 = vmatprep.subr.bf16.mxu0 0
    %316 = vmatpush2.bf16.msra.mxu0 0
    %317 = vmatprep.mubr.bf16.mxu0 0
    %318 = vmatmul.mubr.bf16.gmra.mxu0 %v213
    %v319 = vpop.f32.mrf.mxu0
    %v320 = vadd.f32 %v235, %v319
    %v321 = vpop.f32.mrf.mxu0
    %v322 = vpop.f32.mrf.mxu0
    %v323 = vadd.f32 %v235, %v322
    %v324 = vpop.f32.mrf.mxu0
    %325 = vdwg.mxu0
    %v326 = vmul.f32 %v320, 0.5
    %v327 = vmul.f32 %v323, 0.5
    %v328 = vmul.f32 %v320, 0.70710677
    %v329 = vmul.f32 %v323, 0.70710677
    %v330 = verf.f32.pop %v328
    %v331 = verf.f32.pop %v329
    %v332 = vadd.f32 %v330, 1.0
    %v333 = vadd.f32 %v331, 1.0
    %v334 = vmul.f32 %v326, %v332
    %v335 = vmul.f32 %v327, %v333
    %v336 = vpack.c.bf16 %v335, %v334
    %v337 = vld [vmem:[#allocation8] sm:$0xff]
    %v338 = vld [vmem:[#allocation8 + $0x8] sm:$0xff]
    %v339 = vld [vmem:[#allocation8 + $0x10] sm:$0xff]
    %v340 = vld [vmem:[#allocation8 + $0x18] sm:$0xff]
    %v341 = vld [vmem:[#allocation8 + $0x20] sm:$0xff]
    %v342 = vld [vmem:[#allocation8 + $0x28] sm:$0xff]
    %v343 = vld [vmem:[#allocation8 + $0x30] sm:$0xff]
    %v344 = vld [vmem:[#allocation8 + $0x38] sm:$0xff]
    %v345 = vld [vmem:[#allocation8 + $0x40] sm:$0xff]
    %v346 = vld [vmem:[#allocation8 + $0x48] sm:$0xff]
    %v347 = vld [vmem:[#allocation8 + $0x50] sm:$0xff]
    %v348 = vld [vmem:[#allocation8 + $0x58] sm:$0xff]
    %v349 = vld [vmem:[#allocation8 + $0x60] sm:$0xff]
    %v350 = vld [vmem:[#allocation8 + $0x68] sm:$0xff]
    %v351 = vld [vmem:[#allocation8 + $0x70] sm:$0xff]
    %v352 = vld [vmem:[#allocation8 + $0x78] sm:$0xff]
    %v353 = vld [vmem:[%s6] sm:$0x3]
    %v355 = vlaneseq
    %v356 = vshrl.u32 %v355, 7
    %v357 = vsub.s32 0, %v356
    %v358 = vrot.slane %v353, %v357
    %v359 = vlaneseq
    %v360 = vshrl.u32 %v359, 7
    %v361 = vsub.s32 1, %v360
    %v362 = vrot.slane %v353, %v361
    %v381 = vunpack.c.l.b16 %v337
    %v382 = vunpack.c.h.b16 %v337
    %v383 = vunpack.c.l.b16 %v338
    %v384 = vunpack.c.h.b16 %v338
    %v385 = vunpack.c.l.b16 %v339
    %v386 = vunpack.c.h.b16 %v339
    %v387 = vunpack.c.l.b16 %v340
    %v388 = vunpack.c.h.b16 %v340
    %v389 = vunpack.c.l.b16 %v341
    %v390 = vunpack.c.h.b16 %v341
    %v391 = vunpack.c.l.b16 %v342
    %v392 = vunpack.c.h.b16 %v342
    %v393 = vunpack.c.l.b16 %v343
    %v394 = vunpack.c.h.b16 %v343
    %v395 = vunpack.c.l.b16 %v344
    %v396 = vunpack.c.h.b16 %v344
    %v397 = vunpack.c.l.b16 %v345
    %v398 = vunpack.c.h.b16 %v345
    %v399 = vunpack.c.l.b16 %v346
    %v400 = vunpack.c.h.b16 %v346
    %v401 = vunpack.c.l.b16 %v347
    %v402 = vunpack.c.h.b16 %v347
    %v403 = vunpack.c.l.b16 %v348
    %v404 = vunpack.c.h.b16 %v348
    %v405 = vunpack.c.l.b16 %v349
    %v406 = vunpack.c.h.b16 %v349
    %v407 = vunpack.c.l.b16 %v350
    %v408 = vunpack.c.h.b16 %v350
    %v409 = vunpack.c.l.b16 %v351
    %v410 = vunpack.c.h.b16 %v351
    %v411 = vunpack.c.l.b16 %v352
    %v412 = vunpack.c.h.b16 %v352
    %v413 = vpack.c.b16 %v383, %v381
    %v414 = vpack.c.b16 %v384, %v382
    %v415 = vpack.c.b16 %v387, %v385
    %v416 = vpack.c.b16 %v388, %v386
    %v417 = vpack.c.b16 %v391, %v389
    %v418 = vpack.c.b16 %v392, %v390
    %v419 = vpack.c.b16 %v395, %v393
    %v420 = vpack.c.b16 %v396, %v394
    %v421 = vpack.c.b16 %v399, %v397
    %v422 = vpack.c.b16 %v400, %v398
    %v423 = vpack.c.b16 %v403, %v401
    %v424 = vpack.c.b16 %v404, %v402
    %v425 = vpack.c.b16 %v407, %v405
    %v426 = vpack.c.b16 %v408, %v406
    %v427 = vpack.c.b16 %v411, %v409
    %v428 = vpack.c.b16 %v412, %v410
    %445 = vmatprep.subr.bf16.mxu0 %v428
    %446 = vmatpush1.bf16.msra.mxu0 %v427
    %447 = vmatprep.subr.bf16.mxu0 %v426
    %448 = vmatpush1.bf16.msra.mxu0 %v425
    %449 = vmatprep.subr.bf16.mxu0 %v424
    %450 = vmatpush1.bf16.msra.mxu0 %v423
    %451 = vmatprep.subr.bf16.mxu0 %v422
    %452 = vmatpush1.bf16.msra.mxu0 %v421
    %453 = vmatprep.subr.bf16.mxu0 %v420
    %454 = vmatpush1.bf16.msra.mxu0 %v419
    %455 = vmatprep.subr.bf16.mxu0 %v418
    %456 = vmatpush1.bf16.msra.mxu0 %v417
    %457 = vmatprep.subr.bf16.mxu0 %v416
    %458 = vmatpush1.bf16.msra.mxu0 %v415
    %459 = vmatprep.subr.bf16.mxu0 %v414
    %460 = vmatpush1.bf16.msra.mxu0 %v413
    %461 = vmatprep.subr.bf16.mxu0 0
    %462 = vmatpush2.bf16.msra.mxu0 0
    %463 = vmatprep.subr.bf16.mxu0 0
    %464 = vmatpush2.bf16.msra.mxu0 0
    %465 = vmatprep.subr.bf16.mxu0 0
    %466 = vmatpush2.bf16.msra.mxu0 0
    %467 = vmatprep.subr.bf16.mxu0 0
    %468 = vmatpush2.bf16.msra.mxu0 0
    %469 = vmatprep.subr.bf16.mxu0 0
    %470 = vmatpush2.bf16.msra.mxu0 0
    %471 = vmatprep.subr.bf16.mxu0 0
    %472 = vmatpush2.bf16.msra.mxu0 0
    %473 = vmatprep.subr.bf16.mxu0 0
    %474 = vmatpush2.bf16.msra.mxu0 0
    %475 = vmatprep.subr.bf16.mxu0 0
    %476 = vmatpush2.bf16.msra.mxu0 0
    %477 = vmatprep.mubr.bf16.mxu0 0
    %478 = vmatmul.mubr.bf16.gmra.mxu0 %v336
    %v479 = vpop.f32.mrf.mxu0
    %v480 = vadd.f32 %v358, %v479
    %v481 = vpop.f32.mrf.mxu0
    %v482 = vadd.f32 %v362, %v481
    %v483 = vpop.f32.mrf.mxu0
    %v484 = vadd.f32 %v358, %v483
    %v485 = vpop.f32.mrf.mxu0
    %v486 = vadd.f32 %v362, %v485
    %487 = vdwg.mxu0
    %488 = vst [vmem:[#allocation10] sm:$0xff] %v480
    %489 = vst [vmem:[#allocation10 + $0x8] sm:$0xff] %v482
    %490 = vst [vmem:[#allocation10 + $0x10] sm:$0xff] %v484
    %491 = vst [vmem:[#allocation10 + $0x18] sm:$0xff] %v486
    // Predicated region
    $region46: #{tpu_custom_call.1} parent=1 // pred_check
      _
    $region47: #{tpu_custom_call.1} parent=1 // pred_check_branch
      %493 = sbr.rel (0) target = $region49
    $region48: #{tpu_custom_call.1} parent=1 // pred_region
      %s495 = ssub.s32 512, 512
      %496 = vsyncadd [#allocation4], %s495
      %s497 = sshll.u32 [#allocation10], 4
      %s498 = int_to_ptr.vmem [resolvable:$true] %s497
      %503 = dma.vmem_to_hbm [thread:$0]  %s498, 512, %s7, [#allocation4], 256, 256, 16
    $region49: #{tpu_custom_call.1} parent=1 // pred_fallthru
      _
    // Predicated region
    $region50: #{tpu_custom_call.1} parent=1 // pred_check
      _
    $region51: #{tpu_custom_call.1} parent=1 // pred_check_branch
      %505 = sbr.rel (0) target = $region53
    $region52: #{tpu_custom_call.1} parent=1 // pred_region
      %506 = dma.done [#allocation4], 512
    $region53: #{tpu_custom_call.1} parent=1 // pred_fallthru
      _
    %507 = vsyncpa [#allocation3], 1
    %508 = vsyncpa [#allocation6], 1
    %509 = vsyncpa [#allocation9], 1
    %510 = vsyncpa [#allocation4], 1

// kernel: tpu_custom_call.1
$region0: #{tpu_custom_call.1}
  #allocation0 [shape = 'u32[]', space=smem, size = 0x4, offset = 0x4, fixed_abs, tag = 'smem constant byte address 0x4 - core index']
  #allocation1 [shape = 'u32[144,128]{1,0:T(1,128)}', space=vmem, size = 0x12000, scoped, tag = 'internal scratch']
  %s0 = inlined_call_operand.hbm [shape: bf16[16,128], index: 0, kind: input, shape index: {}]
  %s1 = inlined_call_operand.hbm [shape: bf16[128,128], index: 1, kind: input, shape index: {}]
  %s2 = inlined_call_operand.vmem [shape: f32[1,128], index: 2, kind: input, shape index: {}]
  %s3 = inlined_call_operand.hbm [shape: bf16[128,128], index: 3, kind: input, shape index: {}]
  %s4 = inlined_call_operand.vmem [shape: f32[1,128], index: 4, kind: input, shape index: {}]
  %s5 = inlined_call_operand.hbm [shape: bf16[128,256], index: 5, kind: input, shape index: {}]
  %s6 = inlined_call_operand.vmem [shape: f32[1,256], index: 6, kind: input, shape index: {}]
  %s7 = inlined_call_operand.hbm [shape: f32[16,256], index: 7, kind: output, shape index: {}]
  %s8 = sld [smem:[#allocation0]]
  $region54: #{tpu_custom_call.1} parent=0
    _
  %s10 = ssub.s32 1, %s8
  %s11 = scalar_select 0, %s10, %s8
  $region1: #{tpu_custom_call.1} parent=0
    #allocation2 [shape = 'u8[4096]{0}', space=vmem, size = 0x1000, scoped, tag = 'input window, operand 0, single buffered']
    #allocation3 [shape = 's32[1]{0}', space=sflag, size = 0x4, scoped, tag = 'scoped memory for tpu_custom_call.1']
    #allocation4 [shape = 's32[1]{0}', space=sflag, size = 0x4, scoped, tag = 'scoped memory for tpu_custom_call.1']
    #allocation5 [shape = 'u8[32768]{0}', space=vmem, size = 0x8000, scoped, tag = 'input window, operand 1, single buffered']
    #allocation6 [shape = 's32[1]{0}', space=sflag, size = 0x4, scoped, tag = 'scoped memory for tpu_custom_call.1']
    #allocation7 [shape = 'u8[32768]{0}', space=vmem, size = 0x8000, scoped, tag = 'input window, operand 3, single buffered']
    #allocation8 [shape = 'u8[65536]{0}', space=vmem, size = 0x10000, scoped, tag = 'input window, operand 5, single buffered']
    #allocation9 [shape = 's32[1]{0}', space=sflag, size = 0x4, scoped, tag = 'scoped memory for tpu_custom_call.1']
    #allocation10 [shape = 'u8[16384]{0}', space=vmem, size = 0x4000, scoped, tag = 'output window, operand 0, single buffered']
    %12 = vsyncpa [#allocation3], 0
    %13 = vsyncpa [#allocation6], 0
    %14 = vsyncpa [#allocation9], 0
    %15 = vsyncpa [#allocation4], 0
    // Predicated region
    $region2: #{tpu_custom_call.1} parent=1 // pred_check
      _
    $region3: #{tpu_custom_call.1} parent=1 // pred_check_branch
      %17 = sbr.rel (0) target = $region5
    $region4: #{tpu_custom_call.1} parent=1 // pred_region
      %s19 = ssub.s32 128, 128
      %20 = vsyncadd [#allocation3], %s19
      %s21 = sshll.u32 [#allocation2], 4
      %s22 = int_to_ptr.vmem [resolvable:$true] %s21
      %27 = dma.hbm_to_vmem [thread:$0]  %s0, 128, %s22, [#allocation3], 64, 64, 4
    $region5: #{tpu_custom_call.1} parent=1 // pred_fallthru
      _
    // Predicated region
    $region6: #{tpu_custom_call.1} parent=1 // pred_check
      _
    $region7: #{tpu_custom_call.1} parent=1 // pred_check_branch
      %29 = sbr.rel (0) target = $region9
    $region8: #{tpu_custom_call.1} parent=1 // pred_region
      %s31 = ssub.s32 1024, 1024
      %32 = vsyncadd [#allocation6], %s31
      %s33 = sshll.u32 [#allocation5], 4
      %s34 = int_to_ptr.vmem [resolvable:$true] %s33
      %39 = dma.hbm_to_vmem [thread:$0]  %s1, 1024, %s34, [#allocation6], 64, 64, 4
    $region9: #{tpu_custom_call.1} parent=1 // pred_fallthru
      _
    // Predicated region
    $region10: #{tpu_custom_call.1} parent=1 // pred_check
      _
    $region11: #{tpu_custom_call.1} parent=1 // pred_check_branch
      %41 = sbr.rel (0) target = $region13
    $region12: #{tpu_custom_call.1} parent=1 // pred_region
      _
    $region13: #{tpu_custom_call.1} parent=1 // pred_fallthru
      _
    // Predicated region
    $region14: #{tpu_custom_call.1} parent=1 // pred_check
      _
    $region15: #{tpu_custom_call.1} parent=1 // pred_check_branch
      %43 = sbr.rel (0) target = $region17
    $region16: #{tpu_custom_call.1} parent=1 // pred_region
      %s45 = ssub.s32 1024, 1024
      %46 = vsyncadd [#allocation6], %s45
      %s47 = sshll.u32 [#allocation7], 4
      %s48 = int_to_ptr.vmem [resolvable:$true] %s47
      %53 = dma.hbm_to_vmem [thread:$0]  %s3, 1024, %s48, [#allocation6], 64, 64, 4
    $region17: #{tpu_custom_call.1} parent=1 // pred_fallthru
      _
    // Predicated region
    $region18: #{tpu_custom_call.1} parent=1 // pred_check
      _
    $region19: #{tpu_custom_call.1} parent=1 // pred_check_branch
      %55 = sbr.rel (0) target = $region21
    $region20: #{tpu_custom_call.1} parent=1 // pred_region
      _
    $region21: #{tpu_custom_call.1} parent=1 // pred_fallthru
      _
    // Predicated region
    $region22: #{tpu_custom_call.1} parent=1 // pred_check
      _
    $region23: #{tpu_custom_call.1} parent=1 // pred_check_branch
      %57 = sbr.rel (0) target = $region25
    $region24: #{tpu_custom_call.1} parent=1 // pred_region
      %s59 = ssub.s32 2048, 2048
      %60 = vsyncadd [#allocation9], %s59
      %s61 = sshll.u32 [#allocation8], 4
      %s62 = int_to_ptr.vmem [resolvable:$true] %s61
      %67 = dma.hbm_to_vmem [thread:$0]  %s5, 2048, %s62, [#allocation9], 128, 128, 8
    $region25: #{tpu_custom_call.1} parent=1 // pred_fallthru
      _
    // Predicated region
    $region26: #{tpu_custom_call.1} parent=1 // pred_check
      _
    $region27: #{tpu_custom_call.1} parent=1 // pred_check_branch
      %69 = sbr.rel (0) target = $region29
    $region28: #{tpu_custom_call.1} parent=1 // pred_region
      _
    $region29: #{tpu_custom_call.1} parent=1 // pred_fallthru
      _
    // Predicated region
    $region30: #{tpu_custom_call.1} parent=1 // pred_check
      _
    $region31: #{tpu_custom_call.1} parent=1 // pred_check_branch
      %71 = sbr.rel (0) target = $region33
    $region32: #{tpu_custom_call.1} parent=1 // pred_region
      %72 = dma.done [#allocation3], 128
    $region33: #{tpu_custom_call.1} parent=1 // pred_fallthru
      _
    // Predicated region
    $region34: #{tpu_custom_call.1} parent=1 // pred_check
      _
    $region35: #{tpu_custom_call.1} parent=1 // pred_check_branch
      %74 = sbr.rel (0) target = $region37
    $region36: #{tpu_custom_call.1} parent=1 // pred_region
      %75 = dma.done [#allocation6], 1024
    $region37: #{tpu_custom_call.1} parent=1 // pred_fallthru
      _
    // Predicated region
    $region38: #{tpu_custom_call.1} parent=1 // pred_check
      _
    $region39: #{tpu_custom_call.1} parent=1 // pred_check_branch
      %77 = sbr.rel (0) target = $region41
    $region40: #{tpu_custom_call.1} parent=1 // pred_region
      %78 = dma.done [#allocation6], 1024
    $region41: #{tpu_custom_call.1} parent=1 // pred_fallthru
      _
    // Predicated region
    $region42: #{tpu_custom_call.1} parent=1 // pred_check
      _
    $region43: #{tpu_custom_call.1} parent=1 // pred_check_branch
      %80 = sbr.rel (0) target = $region45
    $region44: #{tpu_custom_call.1} parent=1 // pred_region
      %81 = dma.done [#allocation9], 2048
    $region45: #{tpu_custom_call.1} parent=1 // pred_fallthru
      _
    %v83 = vld [vmem:[#allocation2] sm:$0xf]
    %v84 = vld [vmem:[#allocation2 + $0x4] sm:$0xf]
    %v85 = vld [vmem:[#allocation5] sm:$0xf]
    %v86 = vld [vmem:[#allocation5 + $0x4] sm:$0xf]
    %v87 = vld [vmem:[#allocation5 + $0x8] sm:$0xf]
    %v88 = vld [vmem:[#allocation5 + $0xc] sm:$0xf]
    %v89 = vld [vmem:[#allocation5 + $0x10] sm:$0xf]
    %v90 = vld [vmem:[#allocation5 + $0x14] sm:$0xf]
    %v91 = vld [vmem:[#allocation5 + $0x18] sm:$0xf]
    %v92 = vld [vmem:[#allocation5 + $0x1c] sm:$0xf]
    %v93 = vld [vmem:[#allocation5 + $0x20] sm:$0xf]
    %v94 = vld [vmem:[#allocation5 + $0x24] sm:$0xf]
    %v95 = vld [vmem:[#allocation5 + $0x28] sm:$0xf]
    %v96 = vld [vmem:[#allocation5 + $0x2c] sm:$0xf]
    %v97 = vld [vmem:[#allocation5 + $0x30] sm:$0xf]
    %v98 = vld [vmem:[#allocation5 + $0x34] sm:$0xf]
    %v99 = vld [vmem:[#allocation5 + $0x38] sm:$0xf]
    %v100 = vld [vmem:[#allocation5 + $0x3c] sm:$0xf]
    %v101 = vld [vmem:[%s2] sm:$0x1]
    %v103 = vlaneseq
    %v104 = vshrl.u32 %v103, 7
    %v105 = vsub.s32 0, %v104
    %v106 = vrot.slane %v101, %v105
    %v110 = vunpack.c.l.b16 %v83
    %v111 = vunpack.c.l.b16 %v84
    %v112 = vpack.c.b16 %v111, %v110
    %v130 = vunpack.c.l.b16 %v85
    %v131 = vunpack.c.l.b16 %v86
    %v132 = vunpack.c.l.b16 %v87
    %v133 = vunpack.c.l.b16 %v88
    %v134 = vunpack.c.l.b16 %v89
    %v135 = vunpack.c.l.b16 %v90
    %v136 = vunpack.c.l.b16 %v91
    %v137 = vunpack.c.l.b16 %v92
    %v138 = vunpack.c.l.b16 %v93
    %v139 = vunpack.c.l.b16 %v94
    %v140 = vunpack.c.l.b16 %v95
    %v141 = vunpack.c.l.b16 %v96
    %v142 = vunpack.c.l.b16 %v97
    %v143 = vunpack.c.l.b16 %v98
    %v144 = vunpack.c.l.b16 %v99
    %v145 = vunpack.c.l.b16 %v100
    %v146 = vpack.c.b16 %v131, %v130
    %v147 = vpack.c.b16 %v133, %v132
    %v148 = vpack.c.b16 %v135, %v134
    %v149 = vpack.c.b16 %v137, %v136
    %v150 = vpack.c.b16 %v139, %v138
    %v151 = vpack.c.b16 %v141, %v140
    %v152 = vpack.c.b16 %v143, %v142
    %v153 = vpack.c.b16 %v145, %v144
    %162 = vmatprep.subr.bf16.mxu0 0
    %163 = vmatpush1.bf16.msra.mxu0 %v153
    %164 = vmatprep.subr.bf16.mxu0 0
    %165 = vmatpush1.bf16.msra.mxu0 %v152
    %166 = vmatprep.subr.bf16.mxu0 0
    %167 = vmatpush1.bf16.msra.mxu0 %v151
    %168 = vmatprep.subr.bf16.mxu0 0
    %169 = vmatpush1.bf16.msra.mxu0 %v150
    %170 = vmatprep.subr.bf16.mxu0 0
    %171 = vmatpush1.bf16.msra.mxu0 %v149
    %172 = vmatprep.subr.bf16.mxu0 0
    %173 = vmatpush1.bf16.msra.mxu0 %v148
    %174 = vmatprep.subr.bf16.mxu0 0
    %175 = vmatpush1.bf16.msra.mxu0 %v147
    %176 = vmatprep.subr.bf16.mxu0 0
    %177 = vmatpush1.bf16.msra.mxu0 %v146
    %178 = vmatprep.subr.bf16.mxu0 0
    %179 = vmatpush2.bf16.msra.mxu0 0
    %180 = vmatprep.subr.bf16.mxu0 0
    %181 = vmatpush2.bf16.msra.mxu0 0
    %182 = vmatprep.subr.bf16.mxu0 0
    %183 = vmatpush2.bf16.msra.mxu0 0
    %184 = vmatprep.subr.bf16.mxu0 0
    %185 = vmatpush2.bf16.msra.mxu0 0
    %186 = vmatprep.subr.bf16.mxu0 0
    %187 = vmatpush2.bf16.msra.mxu0 0
    %188 = vmatprep.subr.bf16.mxu0 0
    %189 = vmatpush2.bf16.msra.mxu0 0
    %190 = vmatprep.subr.bf16.mxu0 0
    %191 = vmatpush2.bf16.msra.mxu0 0
    %192 = vmatprep.subr.bf16.mxu0 0
    %193 = vmatpush2.bf16.msra.mxu0 0
    %194 = vmatprep.mubr.bf16.mxu0 0
    %195 = vmatmul.mubr.bf16.gmra.mxu0 %v112
    %v196 = vpop.f32.mrf.mxu0
    %v197 = vadd.f32 %v106, %v196
    %v198 = vpop.f32.mrf.mxu0
    %v199 = vpop.f32.mrf.mxu0
    %v200 = vadd.f32 %v106, %v199
    %v201 = vpop.f32.mrf.mxu0
    %202 = vdwg.mxu0
    %v203 = vmul.f32 %v197, 0.5
    %v204 = vmul.f32 %v200, 0.5
    %v205 = vmul.f32 %v197, 0.70710677
    %v206 = vmul.f32 %v200, 0.70710677
    %v207 = verf.f32.pop %v205
    %v208 = verf.f32.pop %v206
    %v209 = vadd.f32 %v207, 1.0
    %v210 = vadd.f32 %v208, 1.0
    %v211 = vmul.f32 %v203, %v209
    %v212 = vmul.f32 %v204, %v210
    %v213 = vpack.c.bf16 %v212, %v211
    %v214 = vld [vmem:[#allocation7] sm:$0xf]
    %v215 = vld [vmem:[#allocation7 + $0x4] sm:$0xf]
    %v216 = vld [vmem:[#allocation7 + $0x8] sm:$0xf]
    %v217 = vld [vmem:[#allocation7 + $0xc] sm:$0xf]
    %v218 = vld [vmem:[#allocation7 + $0x10] sm:$0xf]
    %v219 = vld [vmem:[#allocation7 + $0x14] sm:$0xf]
    %v220 = vld [vmem:[#allocation7 + $0x18] sm:$0xf]
    %v221 = vld [vmem:[#allocation7 + $0x1c] sm:$0xf]
    %v222 = vld [vmem:[#allocation7 + $0x20] sm:$0xf]
    %v223 = vld [vmem:[#allocation7 + $0x24] sm:$0xf]
    %v224 = vld [vmem:[#allocation7 + $0x28] sm:$0xf]
    %v225 = vld [vmem:[#allocation7 + $0x2c] sm:$0xf]
    %v226 = vld [vmem:[#allocation7 + $0x30] sm:$0xf]
    %v227 = vld [vmem:[#allocation7 + $0x34] sm:$0xf]
    %v228 = vld [vmem:[#allocation7 + $0x38] sm:$0xf]
    %v229 = vld [vmem:[#allocation7 + $0x3c] sm:$0xf]
    %v230 = vld [vmem:[%s4] sm:$0x1]
    %v232 = vlaneseq
    %v233 = vshrl.u32 %v232, 7
    %v234 = vsub.s32 0, %v233
    %v235 = vrot.slane %v230, %v234
    %v253 = vunpack.c.l.b16 %v214
    %v254 = vunpack.c.l.b16 %v215
    %v255 = vunpack.c.l.b16 %v216
    %v256 = vunpack.c.l.b16 %v217
    %v257 = vunpack.c.l.b16 %v218
    %v258 = vunpack.c.l.b16 %v219
    %v259 = vunpack.c.l.b16 %v220
    %v260 = vunpack.c.l.b16 %v221
    %v261 = vunpack.c.l.b16 %v222
    %v262 = vunpack.c.l.b16 %v223
    %v263 = vunpack.c.l.b16 %v224
    %v264 = vunpack.c.l.b16 %v225
    %v265 = vunpack.c.l.b16 %v226
    %v266 = vunpack.c.l.b16 %v227
    %v267 = vunpack.c.l.b16 %v228
    %v268 = vunpack.c.l.b16 %v229
    %v269 = vpack.c.b16 %v254, %v253
    %v270 = vpack.c.b16 %v256, %v255
    %v271 = vpack.c.b16 %v258, %v257
    %v272 = vpack.c.b16 %v260, %v259
    %v273 = vpack.c.b16 %v262, %v261
    %v274 = vpack.c.b16 %v264, %v263
    %v275 = vpack.c.b16 %v266, %v265
    %v276 = vpack.c.b16 %v268, %v267
    %285 = vmatprep.subr.bf16.mxu0 0
    %286 = vmatpush1.bf16.msra.mxu0 %v276
    %287 = vmatprep.subr.bf16.mxu0 0
    %288 = vmatpush1.bf16.msra.mxu0 %v275
    %289 = vmatprep.subr.bf16.mxu0 0
    %290 = vmatpush1.bf16.msra.mxu0 %v274
    %291 = vmatprep.subr.bf16.mxu0 0
    %292 = vmatpush1.bf16.msra.mxu0 %v273
    %293 = vmatprep.subr.bf16.mxu0 0
    %294 = vmatpush1.bf16.msra.mxu0 %v272
    %295 = vmatprep.subr.bf16.mxu0 0
    %296 = vmatpush1.bf16.msra.mxu0 %v271
    %297 = vmatprep.subr.bf16.mxu0 0
    %298 = vmatpush1.bf16.msra.mxu0 %v270
    %299 = vmatprep.subr.bf16.mxu0 0
    %300 = vmatpush1.bf16.msra.mxu0 %v269
    %301 = vmatprep.subr.bf16.mxu0 0
    %302 = vmatpush2.bf16.msra.mxu0 0
    %303 = vmatprep.subr.bf16.mxu0 0
    %304 = vmatpush2.bf16.msra.mxu0 0
    %305 = vmatprep.subr.bf16.mxu0 0
    %306 = vmatpush2.bf16.msra.mxu0 0
    %307 = vmatprep.subr.bf16.mxu0 0
    %308 = vmatpush2.bf16.msra.mxu0 0
    %309 = vmatprep.subr.bf16.mxu0 0
    %310 = vmatpush2.bf16.msra.mxu0 0
    %311 = vmatprep.subr.bf16.mxu0 0
    %312 = vmatpush2.bf16.msra.mxu0 0
    %313 = vmatprep.subr.bf16.mxu0 0
    %314 = vmatpush2.bf16.msra.mxu0 0
    %315 = vmatprep.subr.bf16.mxu0 0
    %316 = vmatpush2.bf16.msra.mxu0 0
    %317 = vmatprep.mubr.bf16.mxu0 0
    %318 = vmatmul.mubr.bf16.gmra.mxu0 %v213
    %v319 = vpop.f32.mrf.mxu0
    %v320 = vadd.f32 %v235, %v319
    %v321 = vpop.f32.mrf.mxu0
    %v322 = vpop.f32.mrf.mxu0
    %v323 = vadd.f32 %v235, %v322
    %v324 = vpop.f32.mrf.mxu0
    %325 = vdwg.mxu0
    %v326 = vmul.f32 %v320, 0.5
    %v327 = vmul.f32 %v323, 0.5
    %v328 = vmul.f32 %v320, 0.70710677
    %v329 = vmul.f32 %v323, 0.70710677
    %v330 = verf.f32.pop %v328
    %v331 = verf.f32.pop %v329
    %v332 = vadd.f32 %v330, 1.0
    %v333 = vadd.f32 %v331, 1.0
    %v334 = vmul.f32 %v326, %v332
    %v335 = vmul.f32 %v327, %v333
    %v336 = vpack.c.bf16 %v335, %v334
    %v337 = vld [vmem:[#allocation8] sm:$0xff]
    %v338 = vld [vmem:[#allocation8 + $0x8] sm:$0xff]
    %v339 = vld [vmem:[#allocation8 + $0x10] sm:$0xff]
    %v340 = vld [vmem:[#allocation8 + $0x18] sm:$0xff]
    %v341 = vld [vmem:[#allocation8 + $0x20] sm:$0xff]
    %v342 = vld [vmem:[#allocation8 + $0x28] sm:$0xff]
    %v343 = vld [vmem:[#allocation8 + $0x30] sm:$0xff]
    %v344 = vld [vmem:[#allocation8 + $0x38] sm:$0xff]
    %v345 = vld [vmem:[#allocation8 + $0x40] sm:$0xff]
    %v346 = vld [vmem:[#allocation8 + $0x48] sm:$0xff]
    %v347 = vld [vmem:[#allocation8 + $0x50] sm:$0xff]
    %v348 = vld [vmem:[#allocation8 + $0x58] sm:$0xff]
    %v349 = vld [vmem:[#allocation8 + $0x60] sm:$0xff]
    %v350 = vld [vmem:[#allocation8 + $0x68] sm:$0xff]
    %v351 = vld [vmem:[#allocation8 + $0x70] sm:$0xff]
    %v352 = vld [vmem:[#allocation8 + $0x78] sm:$0xff]
    %v353 = vld [vmem:[%s6] sm:$0x3]
    %v355 = vlaneseq
    %v356 = vshrl.u32 %v355, 7
    %v357 = vsub.s32 0, %v356
    %v358 = vrot.slane %v353, %v357
    %v359 = vlaneseq
    %v360 = vshrl.u32 %v359, 7
    %v361 = vsub.s32 1, %v360
    %v362 = vrot.slane %v353, %v361
    %v381 = vunpack.c.l.b16 %v337
    %v382 = vunpack.c.h.b16 %v337
    %v383 = vunpack.c.l.b16 %v338
    %v384 = vunpack.c.h.b16 %v338
    %v385 = vunpack.c.l.b16 %v339
    %v386 = vunpack.c.h.b16 %v339
    %v387 = vunpack.c.l.b16 %v340
    %v388 = vunpack.c.h.b16 %v340
    %v389 = vunpack.c.l.b16 %v341
    %v390 = vunpack.c.h.b16 %v341
    %v391 = vunpack.c.l.b16 %v342
    %v392 = vunpack.c.h.b16 %v342
    %v393 = vunpack.c.l.b16 %v343
    %v394 = vunpack.c.h.b16 %v343
    %v395 = vunpack.c.l.b16 %v344
    %v396 = vunpack.c.h.b16 %v344
    %v397 = vunpack.c.l.b16 %v345
    %v398 = vunpack.c.h.b16 %v345
    %v399 = vunpack.c.l.b16 %v346
    %v400 = vunpack.c.h.b16 %v346
    %v401 = vunpack.c.l.b16 %v347
    %v402 = vunpack.c.h.b16 %v347
    %v403 = vunpack.c.l.b16 %v348
    %v404 = vunpack.c.h.b16 %v348
    %v405 = vunpack.c.l.b16 %v349
    %v406 = vunpack.c.h.b16 %v349
    %v407 = vunpack.c.l.b16 %v350
    %v408 = vunpack.c.h.b16 %v350
    %v409 = vunpack.c.l.b16 %v351
    %v410 = vunpack.c.h.b16 %v351
    %v411 = vunpack.c.l.b16 %v352
    %v412 = vunpack.c.h.b16 %v352
    %v413 = vpack.c.b16 %v383, %v381
    %v414 = vpack.c.b16 %v384, %v382
    %v415 = vpack.c.b16 %v387, %v385
    %v416 = vpack.c.b16 %v388, %v386
    %v417 = vpack.c.b16 %v391, %v389
    %v418 = vpack.c.b16 %v392, %v390
    %v419 = vpack.c.b16 %v395, %v393
    %v420 = vpack.c.b16 %v396, %v394
    %v421 = vpack.c.b16 %v399, %v397
    %v422 = vpack.c.b16 %v400, %v398
    %v423 = vpack.c.b16 %v403, %v401
    %v424 = vpack.c.b16 %v404, %v402
    %v425 = vpack.c.b16 %v407, %v405
    %v426 = vpack.c.b16 %v408, %v406
    %v427 = vpack.c.b16 %v411, %v409
    %v428 = vpack.c.b16 %v412, %v410
    %445 = vmatprep.subr.bf16.mxu0 %v428
    %446 = vmatpush1.bf16.msra.mxu0 %v427
    %447 = vmatprep.subr.bf16.mxu0 %v426
    %448 = vmatpush1.bf16.msra.mxu0 %v425
    %449 = vmatprep.subr.bf16.mxu0 %v424
    %450 = vmatpush1.bf16.msra.mxu0 %v423
    %451 = vmatprep.subr.bf16.mxu0 %v422
    %452 = vmatpush1.bf16.msra.mxu0 %v421
    %453 = vmatprep.subr.bf16.mxu0 %v420
    %454 = vmatpush1.bf16.msra.mxu0 %v419
    %455 = vmatprep.subr.bf16.mxu0 %v418
    %456 = vmatpush1.bf16.msra.mxu0 %v417
    %457 = vmatprep.subr.bf16.mxu0 %v416
    %458 = vmatpush1.bf16.msra.mxu0 %v415
    %459 = vmatprep.subr.bf16.mxu0 %v414
    %460 = vmatpush1.bf16.msra.mxu0 %v413
    %461 = vmatprep.subr.bf16.mxu0 0
    %462 = vmatpush2.bf16.msra.mxu0 0
    %463 = vmatprep.subr.bf16.mxu0 0
    %464 = vmatpush2.bf16.msra.mxu0 0
    %465 = vmatprep.subr.bf16.mxu0 0
    %466 = vmatpush2.bf16.msra.mxu0 0
    %467 = vmatprep.subr.bf16.mxu0 0
    %468 = vmatpush2.bf16.msra.mxu0 0
    %469 = vmatprep.subr.bf16.mxu0 0
    %470 = vmatpush2.bf16.msra.mxu0 0
    %471 = vmatprep.subr.bf16.mxu0 0
    %472 = vmatpush2.bf16.msra.mxu0 0
    %473 = vmatprep.subr.bf16.mxu0 0
    %474 = vmatpush2.bf16.msra.mxu0 0
    %475 = vmatprep.subr.bf16.mxu0 0
    %476 = vmatpush2.bf16.msra.mxu0 0
    %477 = vmatprep.mubr.bf16.mxu0 0
    %478 = vmatmul.mubr.bf16.gmra.mxu0 %v336
    %v479 = vpop.f32.mrf.mxu0
    %v480 = vadd.f32 %v358, %v479
    %v481 = vpop.f32.mrf.mxu0
    %v482 = vadd.f32 %v362, %v481
    %v483 = vpop.f32.mrf.mxu0
    %v484 = vadd.f32 %v358, %v483
    %v485 = vpop.f32.mrf.mxu0
    %v486 = vadd.f32 %v362, %v485
    %487 = vdwg.mxu0
    %488 = vst [vmem:[#allocation10] sm:$0xff] %v480
    %489 = vst [vmem:[#allocation10 + $0x8] sm:$0xff] %v482
    %490 = vst [vmem:[#allocation10 + $0x10] sm:$0xff] %v484
    %491 = vst [vmem:[#allocation10 + $0x18] sm:$0xff] %v486
    // Predicated region
    $region46: #{tpu_custom_call.1} parent=1 // pred_check
      _
    $region47: #{tpu_custom_call.1} parent=1 // pred_check_branch
      %493 = sbr.rel (0) target = $region49
    $region48: #{tpu_custom_call.1} parent=1 // pred_region
      %s495 = ssub.s32 512, 512
      %496 = vsyncadd [#allocation4], %s495
      %s497 = sshll.u32 [#allocation10], 4
      %s498 = int_to_ptr.vmem [resolvable:$true] %s497
      %503 = dma.vmem_to_hbm [thread:$0]  %s498, 512, %s7, [#allocation4], 256, 256, 16
    $region49: #{tpu_custom_call.1} parent=1 // pred_fallthru
      _
    // Predicated region
    $region50: #{tpu_custom_call.1} parent=1 // pred_check
      _
    $region51: #{tpu_custom_call.1} parent=1 // pred_check_branch
      %505 = sbr.rel (0) target = $region53
    $region52: #{tpu_custom_call.1} parent=1 // pred_region
      %506 = dma.done [#allocation4], 512
    $region53: #{tpu_custom_call.1} parent=1 // pred_fallthru
      _
    %507 = vsyncpa [#allocation3], 1
    %508 = vsyncpa [#allocation6], 1
    %509 = vsyncpa [#allocation9], 1
    %510 = vsyncpa [#allocation4], 1

</llo_original>
